<compile_context>
chip_gen: v5e
topology: v5e:2x2
jax: 0.10.0
libtpu: 0.0.40
codegen_flags: <defaults>
</compile_context>

<pallas_src>
import functools

import jax
import jax.numpy as jnp
from jax.experimental import pallas as pl
from jax.experimental.pallas import tpu as pltpu


# ---------------------------- Pallas kernel ----------------------------

def _mlp_res_kernel(x_ref, w_in_ref, b1_ref, w2t_ref, b_out_ref, o_ref, *, hid):
    """One (batch, point-tile) step of the fused residual MLP.

    x_ref     : (cin, tn)        bf16   point tile (points on the lane axis)
    w_in_ref  : (hid+cout, cin)  bf16   [w1^T ; ws^T] (resident)
    b1_ref    : (hid, 1)         f32
    w2t_ref   : (cout, hid)      bf16   w2^T (resident)
    b_out_ref : (cout, 1)        f32    b2 + bs (pre-fused)
    o_ref     : (cout, tn)       out dtype
    """
    x = x_ref[...]
    # Single 256-wide MXU pass produces both the hidden pre-activation and the
    # shortcut projection. hid is a multiple of 8 (128 by default) so the row
    # slices below are sublane-aligned (no layout shuffle).
    z = jnp.dot(w_in_ref[...], x, preferred_element_type=jnp.float32)   # (hid+cout, tn)
    h = jnp.maximum(z[:hid, :] + b1_ref[...], 0.0)                       # f32 epilogue
    shortcut = z[hid:, :]
    y = jnp.dot(w2t_ref[...], h.astype(jnp.bfloat16),
                preferred_element_type=jnp.float32)
    o_ref[...] = (y + shortcut + b_out_ref[...]).astype(o_ref.dtype)


# ---------------------------- Wrapper ----------------------------

def mlp_res_forward(params, x, *, tn_target=1024, out_dtype=jnp.bfloat16):
    """Fused MLP_Res on the native layout. x: (B, in_dim, N) -> (B, out_dim, N).

    tn_target must be a multiple of 128; the point tile is min(N, tn_target) and the
    last tile may be ragged (handled by masked output stores, no padding pass).
    """
    B, cin, N = x.shape
    hid = params["w1"].shape[1]
    cout = params["w2"].shape[1]

    # Host-side (tiny, weight-only) prep: transpose + concat + bias fusion.
    w_in = jnp.concatenate(
        [params["w1"].T, params["ws"].T], axis=0).astype(jnp.bfloat16)   # (hid+cout, cin)
    w2t = params["w2"].T.astype(jnp.bfloat16)                            # (cout, hid)
    b1c = params["b1"].reshape(hid, 1).astype(jnp.float32)
    boc = (params["b2"] + params["bs"]).reshape(cout, 1).astype(jnp.float32)
    xb = x.astype(jnp.bfloat16)

    # Point-axis tiling: lane-dense multiples of 128; single full-extent tile when
    # N is small. Last tile may overhang N -> OOB lanes masked on store.
    if N <= tn_target:
        tn, n_tiles = N, 1
    else:
        tn = tn_target
        n_tiles = pl.cdiv(N, tn)

    kernel = functools.partial(_mlp_res_kernel, hid=hid)

    out = pl.pallas_call(
        kernel,
        grid=(B, n_tiles),
        in_specs=[
            pl.BlockSpec((pl.Squeezed(), cin, tn), lambda b, j: (b, 0, j)),  # x tile
            pl.BlockSpec((hid + cout, cin), lambda b, j: (0, 0)),            # [w1|ws]^T
            pl.BlockSpec((hid, 1), lambda b, j: (0, 0)),                     # b1
            pl.BlockSpec((cout, hid), lambda b, j: (0, 0)),                  # w2^T
            pl.BlockSpec((cout, 1), lambda b, j: (0, 0)),                    # b2 + bs
        ],
        out_specs=pl.BlockSpec((pl.Squeezed(), cout, tn), lambda b, j: (b, 0, j)),
        out_shape=jax.ShapeDtypeStruct((B, cout, N), out_dtype),
        compiler_params=pltpu.CompilerParams(
            dimension_semantics=("parallel", "parallel")),
    )(xb, w_in, b1c, w2t, boc)
    return out


# ---------------------------- Reference & params ----------------------------

def mlp_res_ref(params, x):
    """Plain-JAX f32 reference of the PyTorch forward."""
    def pw(x_bcn, w, b):  # 1x1 Conv1d: (B,Cin,N) x (Cin,Cout) -> (B,Cout,N)
        return jnp.einsum("bcn,cd->bdn", x_bcn, w) + b[None, :, None]
    h = jax.nn.relu(pw(x, params["w1"], params["b1"]))
    return pw(h, params["w2"], params["b2"]) + pw(x, params["ws"], params["bs"])


def init_params(key, in_dim, hidden_dim, out_dim):
    ks = jax.random.split(key, 6)
    s = 0.1
    return {
        "w1": s * jax.random.normal(ks[0], (in_dim, hidden_dim), jnp.float32),
        "b1": s * jax.random.normal(ks[1], (hidden_dim,), jnp.float32),
        "w2": s * jax.random.normal(ks[2], (hidden_dim, out_dim), jnp.float32),
        "b2": s * jax.random.normal(ks[3], (out_dim,), jnp.float32),
        "ws": s * jax.random.normal(ks[4], (in_dim, out_dim), jnp.float32),
        "bs": s * jax.random.normal(ks[5], (out_dim,), jnp.float32),
    }


# ---------------------------- Main ----------------------------

if __name__ == "__main__":
    # Module defaults: in_dim = hidden_dim = out_dim = 128 (small B, N).
    B, N = 2, 64
    in_dim, hidden_dim, out_dim = 128, 128, 128

    root = jax.random.PRNGKey(0)
    kx, kw, kx2 = jax.random.split(root, 3)
    x = jax.random.normal(kx, (B, in_dim, N), jnp.float32)
    params = init_params(kw, in_dim, hidden_dim, out_dim)

    fwd = jax.jit(mlp_res_forward)
    out = fwd(params, x)
    jax.block_until_ready(out)

    assert out.shape == (B, out_dim, N)
    assert out.dtype == jnp.bfloat16
    out_f32 = out.astype(jnp.float32)
    assert bool(jnp.all(jnp.isfinite(out_f32)))

    ref = mlp_res_ref(params, x)
    err = float(jnp.max(jnp.abs(out_f32 - ref)))
    # bf16 MXU operands + bf16 output (f32 accumulation) vs f32 reference.
    assert err < 1e-1, f"max abs error vs f32 reference too large: {err}"

    # Exercise the ragged-last-tile path (N not a multiple of the 128-wide point tile).
    N2 = 200
    x2 = jax.random.normal(kx2, (B, in_dim, N2), jnp.float32)
    fwd_ragged = jax.jit(functools.partial(mlp_res_forward, tn_target=128))
    out2 = fwd_ragged(params, x2)
    jax.block_until_ready(out2)
    assert out2.shape == (B, out_dim, N2)
    ref2 = mlp_res_ref(params, x2)
    err2 = float(jnp.max(jnp.abs(out2.astype(jnp.float32) - ref2)))
    assert err2 < 1e-1, f"ragged-tile max abs error too large: {err2}"

    print("KERNEL_OK")
</pallas_src>

<mosaic_0001>
module attributes {stable_mosaic.version = 11 : i64} {
  func.func @_mlp_res_kernel(%arg0: i32, %arg1: i32, %arg2: memref<1x128x64xbf16, #tpu.memory_space<vmem>>, %arg3: memref<256x128xbf16, #tpu.memory_space<vmem>>, %arg4: memref<128x1xf32, #tpu.memory_space<vmem>>, %arg5: memref<128x128xbf16, #tpu.memory_space<vmem>>, %arg6: memref<128x1xf32, #tpu.memory_space<vmem>>, %arg7: memref<1x128x64xbf16, #tpu.memory_space<vmem>>) attributes {dimension_semantics = [#tpu.dimension_semantics<parallel>, #tpu.dimension_semantics<parallel>], iteration_bounds = array<i64: 2, 1>, scalar_prefetch = 0 : i64, scratch_operands = 0 : i64, tpu.core_type = #tpu.core_type<tc>, window_params = [{transform_indices = @transform_0, window_bounds = array<i64: 1, 128, 64>}, {pipeline_mode = #tpu.pipeline_mode<synchronous>, transform_indices = @transform_1, window_bounds = array<i64: 256, 128>}, {pipeline_mode = #tpu.pipeline_mode<synchronous>, transform_indices = @transform_2, window_bounds = array<i64: 128, 1>}, {pipeline_mode = #tpu.pipeline_mode<synchronous>, transform_indices = @transform_3, window_bounds = array<i64: 128, 128>}, {pipeline_mode = #tpu.pipeline_mode<synchronous>, transform_indices = @transform_4, window_bounds = array<i64: 128, 1>}, {transform_indices = @transform_5, window_bounds = array<i64: 1, 128, 64>}]} {
    %c0 = arith.constant 0 : index
    %c0_0 = arith.constant 0 : index
    %c0_1 = arith.constant 0 : index
    %0 = vector.load %arg2[%c0, %c0_0, %c0_1] : memref<1x128x64xbf16, #tpu.memory_space<vmem>>, vector<1x128x64xbf16>
    %1 = vector.shape_cast %0 : vector<1x128x64xbf16> to vector<128x64xbf16>
    %c0_2 = arith.constant 0 : index
    %c0_3 = arith.constant 0 : index
    %2 = vector.load %arg3[%c0_2, %c0_3] : memref<256x128xbf16, #tpu.memory_space<vmem>>, vector<256x128xbf16>
    %cst = arith.constant dense<0.000000e+00> : vector<256x64xf32>
    %3 = tpu.matmul %2, %1, %cst {dimension_numbers = #tpu.dot_dimension_numbers<[1], [0], [0], [1], [0, 0, 1, 1], [], []>} : vector<256x128xbf16>, vector<128x64xbf16>, vector<256x64xf32> -> vector<256x64xf32>
    %4 = vector.extract_strided_slice %3 {offsets = [0, 0], sizes = [128, 64], strides = [1, 1]} : vector<256x64xf32> to vector<128x64xf32>
    %c0_4 = arith.constant 0 : index
    %c0_5 = arith.constant 0 : index
    %5 = vector.load %arg4[%c0_4, %c0_5] : memref<128x1xf32, #tpu.memory_space<vmem>>, vector<128x1xf32>
    %6 = vector.broadcast %5 : vector<128x1xf32> to vector<128x64xf32>
    %7 = arith.addf %4, %6 : vector<128x64xf32>
    %cst_6 = arith.constant 0.000000e+00 : f32
    %8 = vector.broadcast %cst_6 : f32 to vector<128x64xf32>
    %9 = arith.maximumf %7, %8 : vector<128x64xf32>
    %10 = vector.extract_strided_slice %3 {offsets = [128, 0], sizes = [128, 64], strides = [1, 1]} : vector<256x64xf32> to vector<128x64xf32>
    %c0_7 = arith.constant 0 : index
    %c0_8 = arith.constant 0 : index
    %11 = vector.load %arg5[%c0_7, %c0_8] : memref<128x128xbf16, #tpu.memory_space<vmem>>, vector<128x128xbf16>
    %12 = arith.truncf %9 : vector<128x64xf32> to vector<128x64xbf16>
    %cst_9 = arith.constant dense<0.000000e+00> : vector<128x64xf32>
    %13 = tpu.matmul %11, %12, %cst_9 {dimension_numbers = #tpu.dot_dimension_numbers<[1], [0], [0], [1], [0, 0, 1, 1], [], []>} : vector<128x128xbf16>, vector<128x64xbf16>, vector<128x64xf32> -> vector<128x64xf32>
    %14 = arith.addf %13, %10 : vector<128x64xf32>
    %c0_10 = arith.constant 0 : index
    %c0_11 = arith.constant 0 : index
    %15 = vector.load %arg6[%c0_10, %c0_11] : memref<128x1xf32, #tpu.memory_space<vmem>>, vector<128x1xf32>
    %16 = vector.broadcast %15 : vector<128x1xf32> to vector<128x64xf32>
    %17 = arith.addf %14, %16 : vector<128x64xf32>
    %18 = arith.truncf %17 : vector<128x64xf32> to vector<128x64xbf16>
    %c0_12 = arith.constant 0 : index
    %c0_13 = arith.constant 0 : index
    %c0_14 = arith.constant 0 : index
    %19 = vector.load %arg7[%c0_12, %c0_13, %c0_14] : memref<1x128x64xbf16, #tpu.memory_space<vmem>>, vector<1x128x64xbf16>
    %20 = vector.shape_cast %19 : vector<1x128x64xbf16> to vector<128x64xbf16>
    %21 = vector.shape_cast %18 : vector<128x64xbf16> to vector<1x128x64xbf16>
    tpu.vector_store %arg7[%c0_12, %c0_13, %c0_14], %21 {strides = array<i32>} : memref<1x128x64xbf16, #tpu.memory_space<vmem>>, vector<1x128x64xbf16>,
    return
  }
  func.func @transform_0(%arg0: i32, %arg1: i32) -> (i32, i32, i32) {
    %c0_i32 = arith.constant 0 : i32
    %c0_i32_0 = arith.constant 0 : i32
    return %arg0, %c0_i32, %arg1 : i32, i32, i32
  }
  func.func @transform_1(%arg0: i32, %arg1: i32) -> (i32, i32) {
    %c0_i32 = arith.constant 0 : i32
    %c0_i32_0 = arith.constant 0 : i32
    %c0_i32_1 = arith.constant 0 : i32
    return %c0_i32, %c0_i32_0 : i32, i32
  }
  func.func @transform_2(%arg0: i32, %arg1: i32) -> (i32, i32) {
    %c0_i32 = arith.constant 0 : i32
    %c0_i32_0 = arith.constant 0 : i32
    %c0_i32_1 = arith.constant 0 : i32
    return %c0_i32, %c0_i32_0 : i32, i32
  }
  func.func @transform_3(%arg0: i32, %arg1: i32) -> (i32, i32) {
    %c0_i32 = arith.constant 0 : i32
    %c0_i32_0 = arith.constant 0 : i32
    %c0_i32_1 = arith.constant 0 : i32
    return %c0_i32, %c0_i32_0 : i32, i32
  }
  func.func @transform_4(%arg0: i32, %arg1: i32) -> (i32, i32) {
    %c0_i32 = arith.constant 0 : i32
    %c0_i32_0 = arith.constant 0 : i32
    %c0_i32_1 = arith.constant 0 : i32
    return %c0_i32, %c0_i32_0 : i32, i32
  }
  func.func @transform_5(%arg0: i32, %arg1: i32) -> (i32, i32, i32) {
    %c0_i32 = arith.constant 0 : i32
    %c0_i32_0 = arith.constant 0 : i32
    return %arg0, %c0_i32, %arg1 : i32, i32, i32
  }
}

</mosaic_0001>

<llo_original>
// kernel: mlp_res_forward.1
$region0: #{mlp_res_forward.1}
  #allocation0 [shape = 'u32[]', space=smem, size = 0x4, offset = 0x4, fixed_abs, tag = 'smem constant byte address 0x4 - core index']
  #allocation1 [shape = 'u32[72,128]{1,0:T(1,128)}', space=vmem, size = 0x9000, scoped, tag = 'internal scratch']
  %s0 = inlined_call_operand.vmem [shape: bf16[2,128,64], index: 0, kind: input, shape index: {}]
  %s1 = inlined_call_operand.vmem [shape: bf16[256,128], index: 1, kind: input, shape index: {}]
  %s2 = inlined_call_operand.vmem [shape: f32[128,1], index: 2, kind: input, shape index: {}]
  %s3 = inlined_call_operand.vmem [shape: bf16[128,128], index: 3, kind: input, shape index: {}]
  %s4 = inlined_call_operand.vmem [shape: f32[128,1], index: 4, kind: input, shape index: {}]
  %s5 = inlined_call_operand.vmem [shape: bf16[2,128,64], index: 5, kind: output, shape index: {}]
  %s6 = sld [smem:[#allocation0]]
  $region53: #{mlp_res_forward.1} parent=0
    _
  %s8 = ssub.s32 1, %s6
  %s9 = scalar_select 0, %s8, %s6
  loop: start=0, step=1, limit=4
  $region2: #{mlp_res_forward.1} parent=0 // loop_pre_header
    _
  $region3: #{mlp_res_forward.1} parent=0 // loop_header
    %s11 = sphi 0, %s15
    %p12 = scmp.ge.s32.totalorder %s11, 4
    %s18 = sphi 0, %s30
    %s19 = sphi 0, %s26
    %s20 = sphi 0, %s18
    %s21 = sphi 0, %s19
    %s22 = sphi 0, %s20
    %s23 = sphi 0, %s21
    %s35 = sphi 0, %s37
    %s38 = sphi 0, %s35
    %s39 = sphi 0, %s38
    %s55 = sphi 0, %s39
    %s59 = sphi 0, %s59
    %s61 = sphi 0, %s59
    %s62 = sphi 0, %s61
    %s76 = sphi 0, %s62
    %s80 = sphi 0, %s80
    %s82 = sphi 0, %s80
    %s83 = sphi 0, %s82
    %s97 = sphi 0, %s83
    %s101 = sphi 0, %s101
    %s103 = sphi 0, %s101
    %s104 = sphi 0, %s103
    %s118 = sphi 0, %s104
    %s122 = sphi 0, %s122
    %s124 = sphi 0, %s122
    %s125 = sphi 0, %s124
    %s139 = sphi 0, %s125
    %s147 = sphi 0, %s149
    %s150 = sphi 0, %s147
    %s151 = sphi 0, %s150
    %s167 = sphi 0, %s151
  $region4: #{mlp_res_forward.1} parent=0 // loop_header_branch
    %14 = sbr.rel (%p12) target = $region8
  $region5: #{mlp_res_forward.1} parent=0 // loop_body
    %s16 = ssub.s32 %s11, 1
    %s17 = ssub.s32 %s11, 2
    %s24 = sadd.s32 1, %s19
    %p25 = scmp.ge.s32.totalorder %s24, 1
    %s26 = scalar_select %p25, 0, %s24
    %s27 = sadd.s32 1, %s18
    %s28 = scalar_select %p25, %s27, %s18
    %p29 = scmp.ge.s32.totalorder %s28, 2
    %s30 = scalar_select %p29, 0, %s28
    %s31 = ssub.s32 %s18, %s30
    %s32 = ssub.s32 %s19, %s26
    %s33 = sor.u32 %s31, %s32
    %p34 = scmp.eq.s32.totalorder %s33, 0
    %s36 = sadd.s32 %s35, 1
    %s37 = scalar_select %p34, %s35, %s36
    %p40 = pneg %p34
    %p41 = scmp.eq.s32.totalorder %s11, 1
    %p42 = por %p40, %p41
    %p43 = scmp.ne.s32.totalorder %s35, %s38
    %p44 = scmp.eq.s32.totalorder %s11, 0
    %p45 = por %p43, %p44
    %p46 = scmp.ne.s32.totalorder %s35, %s38
    %p47 = scmp.eq.s32.totalorder %s16, 1
    %p48 = por %p46, %p47
    %p49 = scmp.ne.s32.totalorder %s38, %s39
    %p50 = scmp.eq.s32.totalorder %s16, 0
    %p51 = por %p49, %p50
    %p52 = scmp.ne.s32.totalorder %s38, %s39
    %p53 = scmp.eq.s32.totalorder %s17, 1
    %p54 = por %p52, %p53
    %p56 = scmp.ne.s32.totalorder %s39, %s55
    %p57 = scmp.eq.s32.totalorder %s17, 0
    %p58 = por %p56, %p57
    %s60 = sadd.s32 %s59, 1
    %p63 = scmp.eq.s32.totalorder %s11, 1
    %p64 = scmp.ne.s32.totalorder %s59, %s61
    %p65 = scmp.eq.s32.totalorder %s11, 0
    %p66 = por %p64, %p65
    %p67 = scmp.ne.s32.totalorder %s59, %s61
    %p68 = scmp.eq.s32.totalorder %s16, 1
    %p69 = por %p67, %p68
    %p70 = scmp.ne.s32.totalorder %s61, %s62
    %p71 = scmp.eq.s32.totalorder %s16, 0
    %p72 = por %p70, %p71
    %p73 = scmp.ne.s32.totalorder %s61, %s62
    %p74 = scmp.eq.s32.totalorder %s17, 1
    %p75 = por %p73, %p74
    %p77 = scmp.ne.s32.totalorder %s62, %s76
    %p78 = scmp.eq.s32.totalorder %s17, 0
    %p79 = por %p77, %p78
    %s81 = sadd.s32 %s80, 1
    %p84 = scmp.eq.s32.totalorder %s11, 1
    %p85 = scmp.ne.s32.totalorder %s80, %s82
    %p86 = scmp.eq.s32.totalorder %s11, 0
    %p87 = por %p85, %p86
    %p88 = scmp.ne.s32.totalorder %s80, %s82
    %p89 = scmp.eq.s32.totalorder %s16, 1
    %p90 = por %p88, %p89
    %p91 = scmp.ne.s32.totalorder %s82, %s83
    %p92 = scmp.eq.s32.totalorder %s16, 0
    %p93 = por %p91, %p92
    %p94 = scmp.ne.s32.totalorder %s82, %s83
    %p95 = scmp.eq.s32.totalorder %s17, 1
    %p96 = por %p94, %p95
    %p98 = scmp.ne.s32.totalorder %s83, %s97
    %p99 = scmp.eq.s32.totalorder %s17, 0
    %p100 = por %p98, %p99
    %s102 = sadd.s32 %s101, 1
    %p105 = scmp.eq.s32.totalorder %s11, 1
    %p106 = scmp.ne.s32.totalorder %s101, %s103
    %p107 = scmp.eq.s32.totalorder %s11, 0
    %p108 = por %p106, %p107
    %p109 = scmp.ne.s32.totalorder %s101, %s103
    %p110 = scmp.eq.s32.totalorder %s16, 1
    %p111 = por %p109, %p110
    %p112 = scmp.ne.s32.totalorder %s103, %s104
    %p113 = scmp.eq.s32.totalorder %s16, 0
    %p114 = por %p112, %p113
    %p115 = scmp.ne.s32.totalorder %s103, %s104
    %p116 = scmp.eq.s32.totalorder %s17, 1
    %p117 = por %p115, %p116
    %p119 = scmp.ne.s32.totalorder %s104, %s118
    %p120 = scmp.eq.s32.totalorder %s17, 0
    %p121 = por %p119, %p120
    %s123 = sadd.s32 %s122, 1
    %p126 = scmp.eq.s32.totalorder %s11, 1
    %p127 = scmp.ne.s32.totalorder %s122, %s124
    %p128 = scmp.eq.s32.totalorder %s11, 0
    %p129 = por %p127, %p128
    %p130 = scmp.ne.s32.totalorder %s122, %s124
    %p131 = scmp.eq.s32.totalorder %s16, 1
    %p132 = por %p130, %p131
    %p133 = scmp.ne.s32.totalorder %s124, %s125
    %p134 = scmp.eq.s32.totalorder %s16, 0
    %p135 = por %p133, %p134
    %p136 = scmp.ne.s32.totalorder %s124, %s125
    %p137 = scmp.eq.s32.totalorder %s17, 1
    %p138 = por %p136, %p137
    %p140 = scmp.ne.s32.totalorder %s125, %s139
    %p141 = scmp.eq.s32.totalorder %s17, 0
    %p142 = por %p140, %p141
    %s143 = ssub.s32 %s18, %s30
    %s144 = ssub.s32 %s19, %s26
    %s145 = sor.u32 %s143, %s144
    %p146 = scmp.eq.s32.totalorder %s145, 0
    %s148 = sadd.s32 %s147, 1
    %s149 = scalar_select %p146, %s147, %s148
    %p152 = pneg %p146
    %p153 = scmp.eq.s32.totalorder %s11, 1
    %p154 = por %p152, %p153
    %p155 = scmp.ne.s32.totalorder %s147, %s150
    %p156 = scmp.eq.s32.totalorder %s11, 0
    %p157 = por %p155, %p156
    %p158 = scmp.ne.s32.totalorder %s147, %s150
    %p159 = scmp.eq.s32.totalorder %s16, 1
    %p160 = por %p158, %p159
    %p161 = scmp.ne.s32.totalorder %s150, %s151
    %p162 = scmp.eq.s32.totalorder %s16, 0
    %p163 = por %p161, %p162
    %p164 = scmp.ne.s32.totalorder %s150, %s151
    %p165 = scmp.eq.s32.totalorder %s17, 1
    %p166 = por %p164, %p165
    %p168 = scmp.ne.s32.totalorder %s151, %s167
    %p169 = scmp.eq.s32.totalorder %s17, 0
    %p170 = por %p168, %p169
    %p171 = scmp.le.s32.totalorder 1, %s11
    %p172 = scmp.lt.s32.totalorder %s11, 3
    %p173 = pnand %p171, %p172
    %p174 = pneg %p173
    // Predicated region
    $region9: #{mlp_res_forward.1} parent=5 // pred_check
      _
    $region10: #{mlp_res_forward.1} parent=5 // pred_check_branch
      %176 = sbr.rel (%p173) target = $region12
    $region11: #{mlp_res_forward.1} parent=5 // pred_region
      %s177 = ssub.s32 %s11, 1
      // Predicated region
      $region13: #{mlp_res_forward.1} parent=11 // pred_check
        %p178 = pneg %p72
      $region14: #{mlp_res_forward.1} parent=11 // pred_check_branch
        %180 = sbr.rel (%p178) target = $region16
      $region15: #{mlp_res_forward.1} parent=11 // pred_region
        _
      $region16: #{mlp_res_forward.1} parent=11 // pred_fallthru
        _
      // Predicated region
      $region17: #{mlp_res_forward.1} parent=11 // pred_check
        %p181 = pneg %p93
      $region18: #{mlp_res_forward.1} parent=11 // pred_check_branch
        %183 = sbr.rel (%p181) target = $region20
      $region19: #{mlp_res_forward.1} parent=11 // pred_region
        _
      $region20: #{mlp_res_forward.1} parent=11 // pred_fallthru
        _
      // Predicated region
      $region21: #{mlp_res_forward.1} parent=11 // pred_check
        %p184 = pneg %p114
      $region22: #{mlp_res_forward.1} parent=11 // pred_check_branch
        %186 = sbr.rel (%p184) target = $region24
      $region23: #{mlp_res_forward.1} parent=11 // pred_region
        _
      $region24: #{mlp_res_forward.1} parent=11 // pred_fallthru
        _
      // Predicated region
      $region25: #{mlp_res_forward.1} parent=11 // pred_check
        %p187 = pneg %p135
      $region26: #{mlp_res_forward.1} parent=11 // pred_check_branch
        %189 = sbr.rel (%p187) target = $region28
      $region27: #{mlp_res_forward.1} parent=11 // pred_region
        _
      $region28: #{mlp_res_forward.1} parent=11 // pred_fallthru
        _
    $region12: #{mlp_res_forward.1} parent=5 // pred_fallthru
      _
    %p190 = scmp.lt.s32.totalorder %s11, 2
    // Predicated region
    $region29: #{mlp_res_forward.1} parent=5 // pred_check
      %p191 = pneg %p190
    $region30: #{mlp_res_forward.1} parent=5 // pred_check_branch
      %193 = sbr.rel (%p191) target = $region32
    $region31: #{mlp_res_forward.1} parent=5 // pred_region
      // Predicated region
      $region33: #{mlp_res_forward.1} parent=31 // pred_check
        %p194 = pneg %p45
      $region34: #{mlp_res_forward.1} parent=31 // pred_check_branch
        %196 = sbr.rel (%p194) target = $region36
      $region35: #{mlp_res_forward.1} parent=31 // pred_region
        %p197 = scmp.lt.s32.totalorder %s18, 1
        %s198 = scalar_select %p197, %s18, 1
        %p199 = scmp.lt.s32.totalorder %s19, 0
        %s200 = scalar_select %p199, %s19, 0
        %s201 = smul.addr %s198, 16
        %s202 = sadd.s32 %s200, %s201
        %s203 = smul.addr %s202, 4
        %s204 = scalar_lea.vmem %s0, %s203
      $region36: #{mlp_res_forward.1} parent=31 // pred_fallthru
        _
    $region32: #{mlp_res_forward.1} parent=5 // pred_fallthru
      _
    %p205 = scmp.le.s32.totalorder 1, %s11
    %p206 = scmp.lt.s32.totalorder %s11, 3
    %p207 = pnand %p205, %p206
    %p208 = pneg %p207
    // Predicated region
    $region37: #{mlp_res_forward.1} parent=5 // pred_check
      _
    $region38: #{mlp_res_forward.1} parent=5 // pred_check_branch
      %210 = sbr.rel (%p207) target = $region40
    $region39: #{mlp_res_forward.1} parent=5 // pred_region
      %s211 = ssub.s32 %s11, 1
      %p212 = scmp.lt.s32.totalorder %s20, 1
      %s213 = scalar_select %p212, %s20, 1
      %p214 = scmp.lt.s32.totalorder %s21, 0
      %s215 = scalar_select %p214, %s21, 0
      %s216 = smul.addr %s213, 16
      %s217 = sadd.s32 %s215, %s216
      %s218 = smul.addr %s217, 4
      %s219 = scalar_lea.vmem %s0, %s218
      %p220 = pneg %p51
      %p221 = pneg %p48
      %p222 = pneg %p72
      %p223 = pneg %p69
      %p224 = pneg %p93
      %p225 = pneg %p90
      %p226 = pneg %p114
      %p227 = pneg %p111
      %p228 = pneg %p135
      %p229 = pneg %p132
      %p230 = pneg %p163
      %p231 = pneg %p160
      %p232 = scmp.lt.s32.totalorder %s20, 1
      %s233 = scalar_select %p232, %s20, 1
      %p234 = scmp.lt.s32.totalorder %s21, 0
      %s235 = scalar_select %p234, %s21, 0
      %s236 = smul.addr %s233, 16
      %s237 = sadd.s32 %s235, %s236
      %s238 = smul.addr %s237, 4
      %s239 = scalar_lea.vmem %s5, %s238
      %p240 = scmp.lt.s32.totalorder %s20, 1
      %s241 = scalar_select %p240, %s20, 1
      %p242 = scmp.lt.s32.totalorder %s21, 0
      %s243 = scalar_select %p242, %s21, 0
      %s244 = smul.addr %s241, 16
      %s245 = sadd.s32 %s243, %s244
      %s246 = smul.addr %s245, 4
      %s247 = scalar_lea.vmem %s0, %s246
      %p248 = scmp.lt.s32.totalorder %s20, 1
      %s249 = scalar_select %p248, %s20, 1
      %p250 = scmp.lt.s32.totalorder %s21, 0
      %s251 = scalar_select %p250, %s21, 0
      %s252 = smul.addr %s249, 16
      %s253 = sadd.s32 %s251, %s252
      %s254 = smul.addr %s253, 4
      %s255 = scalar_lea.vmem %s5, %s254
      %v256 = vld [vmem:[%s247] sm:$0xf]
      %v257 = vld [vmem:[%s247 + $0x4] sm:$0xf]
      %v258 = vld [vmem:[%s247 + $0x8] sm:$0xf]
      %v259 = vld [vmem:[%s247 + $0xc] sm:$0xf]
      %v260 = vld [vmem:[%s247 + $0x10] sm:$0xf]
      %v261 = vld [vmem:[%s247 + $0x14] sm:$0xf]
      %v262 = vld [vmem:[%s247 + $0x18] sm:$0xf]
      %v263 = vld [vmem:[%s247 + $0x1c] sm:$0xf]
      %v264 = vld [vmem:[%s247 + $0x20] sm:$0xf]
      %v265 = vld [vmem:[%s247 + $0x24] sm:$0xf]
      %v266 = vld [vmem:[%s247 + $0x28] sm:$0xf]
      %v267 = vld [vmem:[%s247 + $0x2c] sm:$0xf]
      %v268 = vld [vmem:[%s247 + $0x30] sm:$0xf]
      %v269 = vld [vmem:[%s247 + $0x34] sm:$0xf]
      %v270 = vld [vmem:[%s247 + $0x38] sm:$0xf]
      %v271 = vld [vmem:[%s247 + $0x3c] sm:$0xf]
      %v272 = vld [vmem:[%s1] sm:$0xf]
      %v273 = vld [vmem:[%s1 + $0x4] sm:$0xf]
      %v274 = vld [vmem:[%s1 + $0x8] sm:$0xf]
      %v275 = vld [vmem:[%s1 + $0xc] sm:$0xf]
      %v276 = vld [vmem:[%s1 + $0x10] sm:$0xf]
      %v277 = vld [vmem:[%s1 + $0x14] sm:$0xf]
      %v278 = vld [vmem:[%s1 + $0x18] sm:$0xf]
      %v279 = vld [vmem:[%s1 + $0x1c] sm:$0xf]
      %v280 = vld [vmem:[%s1 + $0x20] sm:$0xf]
      %v281 = vld [vmem:[%s1 + $0x24] sm:$0xf]
      %v282 = vld [vmem:[%s1 + $0x28] sm:$0xf]
      %v283 = vld [vmem:[%s1 + $0x2c] sm:$0xf]
      %v284 = vld [vmem:[%s1 + $0x30] sm:$0xf]
      %v285 = vld [vmem:[%s1 + $0x34] sm:$0xf]
      %v286 = vld [vmem:[%s1 + $0x38] sm:$0xf]
      %v287 = vld [vmem:[%s1 + $0x3c] sm:$0xf]
      %v288 = vld [vmem:[%s1 + $0x40] sm:$0xf]
      %v289 = vld [vmem:[%s1 + $0x44] sm:$0xf]
      %v290 = vld [vmem:[%s1 + $0x48] sm:$0xf]
      %v291 = vld [vmem:[%s1 + $0x4c] sm:$0xf]
      %v292 = vld [vmem:[%s1 + $0x50] sm:$0xf]
      %v293 = vld [vmem:[%s1 + $0x54] sm:$0xf]
      %v294 = vld [vmem:[%s1 + $0x58] sm:$0xf]
      %v295 = vld [vmem:[%s1 + $0x5c] sm:$0xf]
      %v296 = vld [vmem:[%s1 + $0x60] sm:$0xf]
      %v297 = vld [vmem:[%s1 + $0x64] sm:$0xf]
      %v298 = vld [vmem:[%s1 + $0x68] sm:$0xf]
      %v299 = vld [vmem:[%s1 + $0x6c] sm:$0xf]
      %v300 = vld [vmem:[%s1 + $0x70] sm:$0xf]
      %v301 = vld [vmem:[%s1 + $0x74] sm:$0xf]
      %v302 = vld [vmem:[%s1 + $0x78] sm:$0xf]
      %v303 = vld [vmem:[%s1 + $0x7c] sm:$0xf]
      %v336 = vunpack.c.l.b16 %v272
      %v337 = vunpack.c.l.b16 %v273
      %v338 = vunpack.c.l.b16 %v274
      %v339 = vunpack.c.l.b16 %v275
      %v340 = vunpack.c.l.b16 %v276
      %v341 = vunpack.c.l.b16 %v277
      %v342 = vunpack.c.l.b16 %v278
      %v343 = vunpack.c.l.b16 %v279
      %v344 = vunpack.c.l.b16 %v280
      %v345 = vunpack.c.l.b16 %v281
      %v346 = vunpack.c.l.b16 %v282
      %v347 = vunpack.c.l.b16 %v283
      %v348 = vunpack.c.l.b16 %v284
      %v349 = vunpack.c.l.b16 %v285
      %v350 = vunpack.c.l.b16 %v286
      %v351 = vunpack.c.l.b16 %v287
      %v352 = vunpack.c.l.b16 %v288
      %v353 = vunpack.c.l.b16 %v289
      %v354 = vunpack.c.l.b16 %v290
      %v355 = vunpack.c.l.b16 %v291
      %v356 = vunpack.c.l.b16 %v292
      %v357 = vunpack.c.l.b16 %v293
      %v358 = vunpack.c.l.b16 %v294
      %v359 = vunpack.c.l.b16 %v295
      %v360 = vunpack.c.l.b16 %v296
      %v361 = vunpack.c.l.b16 %v297
      %v362 = vunpack.c.l.b16 %v298
      %v363 = vunpack.c.l.b16 %v299
      %v364 = vunpack.c.l.b16 %v300
      %v365 = vunpack.c.l.b16 %v301
      %v366 = vunpack.c.l.b16 %v302
      %v367 = vunpack.c.l.b16 %v303
      %v368 = vpack.c.b16 %v337, %v336
      %v369 = vpack.c.b16 %v339, %v338
      %v370 = vpack.c.b16 %v341, %v340
      %v371 = vpack.c.b16 %v343, %v342
      %v372 = vpack.c.b16 %v345, %v344
      %v373 = vpack.c.b16 %v347, %v346
      %v374 = vpack.c.b16 %v349, %v348
      %v375 = vpack.c.b16 %v351, %v350
      %v376 = vpack.c.b16 %v353, %v352
      %v377 = vpack.c.b16 %v355, %v354
      %v378 = vpack.c.b16 %v357, %v356
      %v379 = vpack.c.b16 %v359, %v358
      %v380 = vpack.c.b16 %v361, %v360
      %v381 = vpack.c.b16 %v363, %v362
      %v382 = vpack.c.b16 %v365, %v364
      %v383 = vpack.c.b16 %v367, %v366
      %v416 = vunpack.c.l.b16 %v256
      %v417 = vunpack.c.l.b16 %v257
      %v418 = vunpack.c.l.b16 %v258
      %v419 = vunpack.c.l.b16 %v259
      %v420 = vunpack.c.l.b16 %v260
      %v421 = vunpack.c.l.b16 %v261
      %v422 = vunpack.c.l.b16 %v262
      %v423 = vunpack.c.l.b16 %v263
      %v424 = vunpack.c.l.b16 %v264
      %v425 = vunpack.c.l.b16 %v265
      %v426 = vunpack.c.l.b16 %v266
      %v427 = vunpack.c.l.b16 %v267
      %v428 = vunpack.c.l.b16 %v268
      %v429 = vunpack.c.l.b16 %v269
      %v430 = vunpack.c.l.b16 %v270
      %v431 = vunpack.c.l.b16 %v271
      %v432 = vpack.c.b16 %v417, %v416
      %v433 = vpack.c.b16 %v419, %v418
      %v434 = vpack.c.b16 %v421, %v420
      %v435 = vpack.c.b16 %v423, %v422
      %v436 = vpack.c.b16 %v425, %v424
      %v437 = vpack.c.b16 %v427, %v426
      %v438 = vpack.c.b16 %v429, %v428
      %v439 = vpack.c.b16 %v431, %v430
      %448 = vmatpush.bf16.msra.mxu0 %v439
      %449 = vmatpush.bf16.msra.mxu0 %v438
      %450 = vmatpush.bf16.msra.mxu0 %v437
      %451 = vmatpush.bf16.msra.mxu0 %v436
      %452 = vmatpush.bf16.msra.mxu0 %v435
      %453 = vmatpush.bf16.msra.mxu0 %v434
      %454 = vmatpush.bf16.msra.mxu0 %v433
      %455 = vmatpush.bf16.msra.mxu0 %v432
      %456 = vmatmul.bf16.gmra.mxu0 %v368
      %v457 = vpop.f32.mrf.mxu0
      %v458 = vadd.f32 0.0, %v457
      %v459 = vpop.f32.mrf.mxu0
      %v460 = vadd.f32 0.0, %v459
      %461 = vmatmul.bf16.gmra.mxu0 %v369
      %v462 = vpop.f32.mrf.mxu0
      %v463 = vadd.f32 0.0, %v462
      %v464 = vpop.f32.mrf.mxu0
      %v465 = vadd.f32 0.0, %v464
      %466 = vmatmul.bf16.gmra.mxu0 %v370
      %v467 = vpop.f32.mrf.mxu0
      %v468 = vadd.f32 0.0, %v467
      %v469 = vpop.f32.mrf.mxu0
      %v470 = vadd.f32 0.0, %v469
      %471 = vmatmul.bf16.gmra.mxu0 %v371
      %v472 = vpop.f32.mrf.mxu0
      %v473 = vadd.f32 0.0, %v472
      %v474 = vpop.f32.mrf.mxu0
      %v475 = vadd.f32 0.0, %v474
      %476 = vmatmul.bf16.gmra.mxu0 %v372
      %v477 = vpop.f32.mrf.mxu0
      %v478 = vadd.f32 0.0, %v477
      %v479 = vpop.f32.mrf.mxu0
      %v480 = vadd.f32 0.0, %v479
      %481 = vmatmul.bf16.gmra.mxu0 %v373
      %v482 = vpop.f32.mrf.mxu0
      %v483 = vadd.f32 0.0, %v482
      %v484 = vpop.f32.mrf.mxu0
      %v485 = vadd.f32 0.0, %v484
      %486 = vmatmul.bf16.gmra.mxu0 %v374
      %v487 = vpop.f32.mrf.mxu0
      %v488 = vadd.f32 0.0, %v487
      %v489 = vpop.f32.mrf.mxu0
      %v490 = vadd.f32 0.0, %v489
      %491 = vmatmul.bf16.gmra.mxu0 %v375
      %v492 = vpop.f32.mrf.mxu0
      %v493 = vadd.f32 0.0, %v492
      %v494 = vpop.f32.mrf.mxu0
      %v495 = vadd.f32 0.0, %v494
      %496 = vmatmul.bf16.gmra.mxu0 %v376
      %v497 = vpop.f32.mrf.mxu0
      %v498 = vadd.f32 0.0, %v497
      %v499 = vpop.f32.mrf.mxu0
      %v500 = vadd.f32 0.0, %v499
      %501 = vmatmul.bf16.gmra.mxu0 %v377
      %v502 = vpop.f32.mrf.mxu0
      %v503 = vadd.f32 0.0, %v502
      %v504 = vpop.f32.mrf.mxu0
      %v505 = vadd.f32 0.0, %v504
      %506 = vmatmul.bf16.gmra.mxu0 %v378
      %v507 = vpop.f32.mrf.mxu0
      %v508 = vadd.f32 0.0, %v507
      %v509 = vpop.f32.mrf.mxu0
      %v510 = vadd.f32 0.0, %v509
      %511 = vmatmul.bf16.gmra.mxu0 %v379
      %v512 = vpop.f32.mrf.mxu0
      %v513 = vadd.f32 0.0, %v512
      %v514 = vpop.f32.mrf.mxu0
      %v515 = vadd.f32 0.0, %v514
      %516 = vmatmul.bf16.gmra.mxu0 %v380
      %v517 = vpop.f32.mrf.mxu0
      %v518 = vadd.f32 0.0, %v517
      %v519 = vpop.f32.mrf.mxu0
      %v520 = vadd.f32 0.0, %v519
      %521 = vmatmul.bf16.gmra.mxu0 %v381
      %v522 = vpop.f32.mrf.mxu0
      %v523 = vadd.f32 0.0, %v522
      %v524 = vpop.f32.mrf.mxu0
      %v525 = vadd.f32 0.0, %v524
      %526 = vmatmul.bf16.gmra.mxu0 %v382
      %v527 = vpop.f32.mrf.mxu0
      %v528 = vadd.f32 0.0, %v527
      %v529 = vpop.f32.mrf.mxu0
      %v530 = vadd.f32 0.0, %v529
      %531 = vmatmul.bf16.gmra.mxu0 %v383
      %v532 = vpop.f32.mrf.mxu0
      %v533 = vadd.f32 0.0, %v532
      %v534 = vpop.f32.mrf.mxu0
      %v535 = vadd.f32 0.0, %v534
      %536 = vdwg.mxu0
      %v537 = vld [vmem:[%s2] sm:$0xff]
      %v538 = vld [vmem:[%s2 + $0x8] sm:$0xff]
      %v539 = vld [vmem:[%s2 + $0x10] sm:$0xff]
      %v540 = vld [vmem:[%s2 + $0x18] sm:$0xff]
      %v541 = vld [vmem:[%s2 + $0x20] sm:$0xff]
      %v542 = vld [vmem:[%s2 + $0x28] sm:$0xff]
      %v543 = vld [vmem:[%s2 + $0x30] sm:$0xff]
      %v544 = vld [vmem:[%s2 + $0x38] sm:$0xff]
      %v545 = vld [vmem:[%s2 + $0x40] sm:$0xff]
      %v546 = vld [vmem:[%s2 + $0x48] sm:$0xff]
      %v547 = vld [vmem:[%s2 + $0x50] sm:$0xff]
      %v548 = vld [vmem:[%s2 + $0x58] sm:$0xff]
      %v549 = vld [vmem:[%s2 + $0x60] sm:$0xff]
      %v550 = vld [vmem:[%s2 + $0x68] sm:$0xff]
      %v551 = vld [vmem:[%s2 + $0x70] sm:$0xff]
      %v552 = vld [vmem:[%s2 + $0x78] sm:$0xff]
      %554 = vset.pattern.permute.xlu0 0
      %555 = vperm.xlu0 %554, %v537
      %v556 = vpop.permute.xlu0 %555
      %559 = vset.pattern.permute.xlu0 0
      %560 = vperm.xlu0 %559, %v538
      %v561 = vpop.permute.xlu0 %560
      %564 = vset.pattern.permute.xlu0 0
      %565 = vperm.xlu0 %564, %v539
      %v566 = vpop.permute.xlu0 %565
      %569 = vset.pattern.permute.xlu0 0
      %570 = vperm.xlu0 %569, %v540
      %v571 = vpop.permute.xlu0 %570
      %574 = vset.pattern.permute.xlu0 0
      %575 = vperm.xlu0 %574, %v541
      %v576 = vpop.permute.xlu0 %575
      %579 = vset.pattern.permute.xlu0 0
      %580 = vperm.xlu0 %579, %v542
      %v581 = vpop.permute.xlu0 %580
      %584 = vset.pattern.permute.xlu0 0
      %585 = vperm.xlu0 %584, %v543
      %v586 = vpop.permute.xlu0 %585
      %589 = vset.pattern.permute.xlu0 0
      %590 = vperm.xlu0 %589, %v544
      %v591 = vpop.permute.xlu0 %590
      %594 = vset.pattern.permute.xlu0 0
      %595 = vperm.xlu0 %594, %v545
      %v596 = vpop.permute.xlu0 %595
      %599 = vset.pattern.permute.xlu0 0
      %600 = vperm.xlu0 %599, %v546
      %v601 = vpop.permute.xlu0 %600
      %604 = vset.pattern.permute.xlu0 0
      %605 = vperm.xlu0 %604, %v547
      %v606 = vpop.permute.xlu0 %605
      %609 = vset.pattern.permute.xlu0 0
      %610 = vperm.xlu0 %609, %v548
      %v611 = vpop.permute.xlu0 %610
      %614 = vset.pattern.permute.xlu0 0
      %615 = vperm.xlu0 %614, %v549
      %v616 = vpop.permute.xlu0 %615
      %619 = vset.pattern.permute.xlu0 0
      %620 = vperm.xlu0 %619, %v550
      %v621 = vpop.permute.xlu0 %620
      %624 = vset.pattern.permute.xlu0 0
      %625 = vperm.xlu0 %624, %v551
      %v626 = vpop.permute.xlu0 %625
      %629 = vset.pattern.permute.xlu0 0
      %630 = vperm.xlu0 %629, %v552
      %v631 = vpop.permute.xlu0 %630
      %v633 = vadd.f32 %v458, %v556
      %v634 = vadd.f32 %v460, %v561
      %v635 = vadd.f32 %v463, %v566
      %v636 = vadd.f32 %v465, %v571
      %v637 = vadd.f32 %v468, %v576
      %v638 = vadd.f32 %v470, %v581
      %v639 = vadd.f32 %v473, %v586
      %v640 = vadd.f32 %v475, %v591
      %v641 = vadd.f32 %v478, %v596
      %v642 = vadd.f32 %v480, %v601
      %v643 = vadd.f32 %v483, %v606
      %v644 = vadd.f32 %v485, %v611
      %v645 = vadd.f32 %v488, %v616
      %v646 = vadd.f32 %v490, %v621
      %v647 = vadd.f32 %v493, %v626
      %v648 = vadd.f32 %v495, %v631
      %v649 = vmax.f32 %v633, 0.0
      %v650 = vmax.f32 %v634, 0.0
      %v651 = vmax.f32 %v635, 0.0
      %v652 = vmax.f32 %v636, 0.0
      %v653 = vmax.f32 %v637, 0.0
      %v654 = vmax.f32 %v638, 0.0
      %v655 = vmax.f32 %v639, 0.0
      %v656 = vmax.f32 %v640, 0.0
      %v657 = vmax.f32 %v641, 0.0
      %v658 = vmax.f32 %v642, 0.0
      %v659 = vmax.f32 %v643, 0.0
      %v660 = vmax.f32 %v644, 0.0
      %v661 = vmax.f32 %v645, 0.0
      %v662 = vmax.f32 %v646, 0.0
      %v663 = vmax.f32 %v647, 0.0
      %v664 = vmax.f32 %v648, 0.0
      %v665 = vld [vmem:[%s3] sm:$0xf]
      %v666 = vld [vmem:[%s3 + $0x4] sm:$0xf]
      %v667 = vld [vmem:[%s3 + $0x8] sm:$0xf]
      %v668 = vld [vmem:[%s3 + $0xc] sm:$0xf]
      %v669 = vld [vmem:[%s3 + $0x10] sm:$0xf]
      %v670 = vld [vmem:[%s3 + $0x14] sm:$0xf]
      %v671 = vld [vmem:[%s3 + $0x18] sm:$0xf]
      %v672 = vld [vmem:[%s3 + $0x1c] sm:$0xf]
      %v673 = vld [vmem:[%s3 + $0x20] sm:$0xf]
      %v674 = vld [vmem:[%s3 + $0x24] sm:$0xf]
      %v675 = vld [vmem:[%s3 + $0x28] sm:$0xf]
      %v676 = vld [vmem:[%s3 + $0x2c] sm:$0xf]
      %v677 = vld [vmem:[%s3 + $0x30] sm:$0xf]
      %v678 = vld [vmem:[%s3 + $0x34] sm:$0xf]
      %v679 = vld [vmem:[%s3 + $0x38] sm:$0xf]
      %v680 = vld [vmem:[%s3 + $0x3c] sm:$0xf]
      %v681 = vpack.c.bf16 %v650, %v649
      %v682 = vpack.c.bf16 %v652, %v651
      %v683 = vpack.c.bf16 %v654, %v653
      %v684 = vpack.c.bf16 %v656, %v655
      %v685 = vpack.c.bf16 %v658, %v657
      %v686 = vpack.c.bf16 %v660, %v659
      %v687 = vpack.c.bf16 %v662, %v661
      %v688 = vpack.c.bf16 %v664, %v663
      %v705 = vunpack.c.l.b16 %v665
      %v706 = vunpack.c.l.b16 %v666
      %v707 = vunpack.c.l.b16 %v667
      %v708 = vunpack.c.l.b16 %v668
      %v709 = vunpack.c.l.b16 %v669
      %v710 = vunpack.c.l.b16 %v670
      %v711 = vunpack.c.l.b16 %v671
      %v712 = vunpack.c.l.b16 %v672
      %v713 = vunpack.c.l.b16 %v673
      %v714 = vunpack.c.l.b16 %v674
      %v715 = vunpack.c.l.b16 %v675
      %v716 = vunpack.c.l.b16 %v676
      %v717 = vunpack.c.l.b16 %v677
      %v718 = vunpack.c.l.b16 %v678
      %v719 = vunpack.c.l.b16 %v679
      %v720 = vunpack.c.l.b16 %v680
      %v721 = vpack.c.b16 %v706, %v705
      %v722 = vpack.c.b16 %v708, %v707
      %v723 = vpack.c.b16 %v710, %v709
      %v724 = vpack.c.b16 %v712, %v711
      %v725 = vpack.c.b16 %v714, %v713
      %v726 = vpack.c.b16 %v716, %v715
      %v727 = vpack.c.b16 %v718, %v717
      %v728 = vpack.c.b16 %v720, %v719
      %737 = vmatpush.bf16.msra.mxu0 %v688
      %738 = vmatpush.bf16.msra.mxu0 %v687
      %739 = vmatpush.bf16.msra.mxu0 %v686
      %740 = vmatpush.bf16.msra.mxu0 %v685
      %741 = vmatpush.bf16.msra.mxu0 %v684
      %742 = vmatpush.bf16.msra.mxu0 %v683
      %743 = vmatpush.bf16.msra.mxu0 %v682
      %744 = vmatpush.bf16.msra.mxu0 %v681
      %745 = vmatmul.bf16.gmra.mxu0 %v721
      %v746 = vpop.f32.mrf.mxu0
      %v747 = vadd.f32 %v498, %v746
      %v748 = vpop.f32.mrf.mxu0
      %v749 = vadd.f32 %v500, %v748
      %750 = vmatmul.bf16.gmra.mxu0 %v722
      %v751 = vpop.f32.mrf.mxu0
      %v752 = vadd.f32 %v503, %v751
      %v753 = vpop.f32.mrf.mxu0
      %v754 = vadd.f32 %v505, %v753
      %755 = vmatmul.bf16.gmra.mxu0 %v723
      %v756 = vpop.f32.mrf.mxu0
      %v757 = vadd.f32 %v508, %v756
      %v758 = vpop.f32.mrf.mxu0
      %v759 = vadd.f32 %v510, %v758
      %760 = vmatmul.bf16.gmra.mxu0 %v724
      %v761 = vpop.f32.mrf.mxu0
      %v762 = vadd.f32 %v513, %v761
      %v763 = vpop.f32.mrf.mxu0
      %v764 = vadd.f32 %v515, %v763
      %765 = vmatmul.bf16.gmra.mxu0 %v725
      %v766 = vpop.f32.mrf.mxu0
      %v767 = vadd.f32 %v518, %v766
      %v768 = vpop.f32.mrf.mxu0
      %v769 = vadd.f32 %v520, %v768
      %770 = vmatmul.bf16.gmra.mxu0 %v726
      %v771 = vpop.f32.mrf.mxu0
      %v772 = vadd.f32 %v523, %v771
      %v773 = vpop.f32.mrf.mxu0
      %v774 = vadd.f32 %v525, %v773
      %775 = vmatmul.bf16.gmra.mxu0 %v727
      %v776 = vpop.f32.mrf.mxu0
      %v777 = vadd.f32 %v528, %v776
      %v778 = vpop.f32.mrf.mxu0
      %v779 = vadd.f32 %v530, %v778
      %780 = vmatmul.bf16.gmra.mxu0 %v728
      %v781 = vpop.f32.mrf.mxu0
      %v782 = vadd.f32 %v533, %v781
      %v783 = vpop.f32.mrf.mxu0
      %v784 = vadd.f32 %v535, %v783
      %785 = vdwg.mxu0
      %v786 = vld [vmem:[%s4] sm:$0xff]
      %v787 = vld [vmem:[%s4 + $0x8] sm:$0xff]
      %v788 = vld [vmem:[%s4 + $0x10] sm:$0xff]
      %v789 = vld [vmem:[%s4 + $0x18] sm:$0xff]
      %v790 = vld [vmem:[%s4 + $0x20] sm:$0xff]
      %v791 = vld [vmem:[%s4 + $0x28] sm:$0xff]
      %v792 = vld [vmem:[%s4 + $0x30] sm:$0xff]
      %v793 = vld [vmem:[%s4 + $0x38] sm:$0xff]
      %v794 = vld [vmem:[%s4 + $0x40] sm:$0xff]
      %v795 = vld [vmem:[%s4 + $0x48] sm:$0xff]
      %v796 = vld [vmem:[%s4 + $0x50] sm:$0xff]
      %v797 = vld [vmem:[%s4 + $0x58] sm:$0xff]
      %v798 = vld [vmem:[%s4 + $0x60] sm:$0xff]
      %v799 = vld [vmem:[%s4 + $0x68] sm:$0xff]
      %v800 = vld [vmem:[%s4 + $0x70] sm:$0xff]
      %v801 = vld [vmem:[%s4 + $0x78] sm:$0xff]
      %803 = vset.pattern.permute.xlu0 0
      %804 = vperm.xlu0 %803, %v786
      %v805 = vpop.permute.xlu0 %804
      %808 = vset.pattern.permute.xlu0 0
      %809 = vperm.xlu0 %808, %v787
      %v810 = vpop.permute.xlu0 %809
      %813 = vset.pattern.permute.xlu0 0
      %814 = vperm.xlu0 %813, %v788
      %v815 = vpop.permute.xlu0 %814
      %818 = vset.pattern.permute.xlu0 0
      %819 = vperm.xlu0 %818, %v789
      %v820 = vpop.permute.xlu0 %819
      %823 = vset.pattern.permute.xlu0 0
      %824 = vperm.xlu0 %823, %v790
      %v825 = vpop.permute.xlu0 %824
      %828 = vset.pattern.permute.xlu0 0
      %829 = vperm.xlu0 %828, %v791
      %v830 = vpop.permute.xlu0 %829
      %833 = vset.pattern.permute.xlu0 0
      %834 = vperm.xlu0 %833, %v792
      %v835 = vpop.permute.xlu0 %834
      %838 = vset.pattern.permute.xlu0 0
      %839 = vperm.xlu0 %838, %v793
      %v840 = vpop.permute.xlu0 %839
      %843 = vset.pattern.permute.xlu0 0
      %844 = vperm.xlu0 %843, %v794
      %v845 = vpop.permute.xlu0 %844
      %848 = vset.pattern.permute.xlu0 0
      %849 = vperm.xlu0 %848, %v795
      %v850 = vpop.permute.xlu0 %849
      %853 = vset.pattern.permute.xlu0 0
      %854 = vperm.xlu0 %853, %v796
      %v855 = vpop.permute.xlu0 %854
      %858 = vset.pattern.permute.xlu0 0
      %859 = vperm.xlu0 %858, %v797
      %v860 = vpop.permute.xlu0 %859
      %863 = vset.pattern.permute.xlu0 0
      %864 = vperm.xlu0 %863, %v798
      %v865 = vpop.permute.xlu0 %864
      %868 = vset.pattern.permute.xlu0 0
      %869 = vperm.xlu0 %868, %v799
      %v870 = vpop.permute.xlu0 %869
      %873 = vset.pattern.permute.xlu0 0
      %874 = vperm.xlu0 %873, %v800
      %v875 = vpop.permute.xlu0 %874
      %878 = vset.pattern.permute.xlu0 0
      %879 = vperm.xlu0 %878, %v801
      %v880 = vpop.permute.xlu0 %879
      %v882 = vadd.f32 %v747, %v805
      %v883 = vadd.f32 %v749, %v810
      %v884 = vadd.f32 %v752, %v815
      %v885 = vadd.f32 %v754, %v820
      %v886 = vadd.f32 %v757, %v825
      %v887 = vadd.f32 %v759, %v830
      %v888 = vadd.f32 %v762, %v835
      %v889 = vadd.f32 %v764, %v840
      %v890 = vadd.f32 %v767, %v845
      %v891 = vadd.f32 %v769, %v850
      %v892 = vadd.f32 %v772, %v855
      %v893 = vadd.f32 %v774, %v860
      %v894 = vadd.f32 %v777, %v865
      %v895 = vadd.f32 %v779, %v870
      %v896 = vadd.f32 %v782, %v875
      %v897 = vadd.f32 %v784, %v880
      %v898 = vpack.c.bf16 %v882, %v882
      %v899 = vpack.c.bf16 %v883, %v883
      %v900 = vpack.c.bf16 %v884, %v884
      %v901 = vpack.c.bf16 %v885, %v885
      %v902 = vpack.c.bf16 %v886, %v886
      %v903 = vpack.c.bf16 %v887, %v887
      %v904 = vpack.c.bf16 %v888, %v888
      %v905 = vpack.c.bf16 %v889, %v889
      %v906 = vpack.c.bf16 %v890, %v890
      %v907 = vpack.c.bf16 %v891, %v891
      %v908 = vpack.c.bf16 %v892, %v892
      %v909 = vpack.c.bf16 %v893, %v893
      %v910 = vpack.c.bf16 %v894, %v894
      %v911 = vpack.c.bf16 %v895, %v895
      %v912 = vpack.c.bf16 %v896, %v896
      %v913 = vpack.c.bf16 %v897, %v897
      %vm914 = vcmask 519168
      %915 = vst.msk [vmem:[%s255] sm:$0xf] %vm914, %v898
      %916 = vst.msk [vmem:[%s255 + $0x4] sm:$0xf] %vm914, %v899
      %917 = vst.msk [vmem:[%s255 + $0x8] sm:$0xf] %vm914, %v900
      %918 = vst.msk [vmem:[%s255 + $0xc] sm:$0xf] %vm914, %v901
      %919 = vst.msk [vmem:[%s255 + $0x10] sm:$0xf] %vm914, %v902
      %920 = vst.msk [vmem:[%s255 + $0x14] sm:$0xf] %vm914, %v903
      %921 = vst.msk [vmem:[%s255 + $0x18] sm:$0xf] %vm914, %v904
      %922 = vst.msk [vmem:[%s255 + $0x1c] sm:$0xf] %vm914, %v905
      %923 = vst.msk [vmem:[%s255 + $0x20] sm:$0xf] %vm914, %v906
      %924 = vst.msk [vmem:[%s255 + $0x24] sm:$0xf] %vm914, %v907
      %925 = vst.msk [vmem:[%s255 + $0x28] sm:$0xf] %vm914, %v908
      %926 = vst.msk [vmem:[%s255 + $0x2c] sm:$0xf] %vm914, %v909
      %927 = vst.msk [vmem:[%s255 + $0x30] sm:$0xf] %vm914, %v910
      %928 = vst.msk [vmem:[%s255 + $0x34] sm:$0xf] %vm914, %v911
      %929 = vst.msk [vmem:[%s255 + $0x38] sm:$0xf] %vm914, %v912
      %930 = vst.msk [vmem:[%s255 + $0x3c] sm:$0xf] %vm914, %v913
      %p931 = scmp.lt.s32.totalorder %s20, 1
      %s932 = scalar_select %p931, %s20, 1
      %p933 = scmp.lt.s32.totalorder %s21, 0
      %s934 = scalar_select %p933, %s21, 0
      %s935 = smul.addr %s932, 16
      %s936 = sadd.s32 %s934, %s935
      %s937 = smul.addr %s936, 4
      %s938 = scalar_lea.vmem %s5, %s937
      // Predicated region
      $region41: #{mlp_res_forward.1} parent=39 // pred_check
        %p939 = pneg %p160
      $region42: #{mlp_res_forward.1} parent=39 // pred_check_branch
        %941 = sbr.rel (%p939) target = $region44
      $region43: #{mlp_res_forward.1} parent=39 // pred_region
        _
      $region44: #{mlp_res_forward.1} parent=39 // pred_fallthru
        _
    $region40: #{mlp_res_forward.1} parent=5 // pred_fallthru
      _
    %p942 = scmp.le.s32.totalorder 2, %s11
    // Predicated region
    $region45: #{mlp_res_forward.1} parent=5 // pred_check
      %p943 = pneg %p942
    $region46: #{mlp_res_forward.1} parent=5 // pred_check_branch
      %945 = sbr.rel (%p943) target = $region48
    $region47: #{mlp_res_forward.1} parent=5 // pred_region
      %s946 = ssub.s32 %s11, 2
      // Predicated region
      $region49: #{mlp_res_forward.1} parent=47 // pred_check
        %p947 = pneg %p166
      $region50: #{mlp_res_forward.1} parent=47 // pred_check_branch
        %949 = sbr.rel (%p947) target = $region52
      $region51: #{mlp_res_forward.1} parent=47 // pred_region
        %p950 = scmp.lt.s32.totalorder %s22, 1
        %s951 = scalar_select %p950, %s22, 1
        %p952 = scmp.lt.s32.totalorder %s23, 0
        %s953 = scalar_select %p952, %s23, 0
        %s954 = smul.addr %s951, 16
        %s955 = sadd.s32 %s953, %s954
        %s956 = smul.addr %s955, 4
        %s957 = scalar_lea.vmem %s5, %s956
      $region52: #{mlp_res_forward.1} parent=47 // pred_fallthru
        _
    $region48: #{mlp_res_forward.1} parent=5 // pred_fallthru
      _
  $region6: #{mlp_res_forward.1} parent=0 // loop_footer
    %s15 = sadd.s32 1, %s11
  $region7: #{mlp_res_forward.1} parent=0 // loop_footer_branch
    %10 = sbr.rel target = $region3
  $region8: #{mlp_res_forward.1} parent=0 // loop_exit
    _

</llo_original>
